<compile_context>
chip_gen: v5e
topology: v5e:2x2
jax: 0.10.0
libtpu: 0.0.40
codegen_flags: <defaults>
</compile_context>

<pallas_src>
import math

import jax
import jax.numpy as jnp
from jax import lax
from jax.experimental import pallas as pl
from jax.experimental.pallas import tpu as pltpu


def _xavier_uniform(key, shape, fan_in, fan_out, gain):
    bound = gain * math.sqrt(6.0 / (fan_in + fan_out))
    return jax.random.uniform(key, shape, jnp.float32, -bound, bound)


def _choose_group_tile(t_grp, tg_req, batch):
    """Pick the grouped-time tile (sublane dim of the blocks).

    Multiple of 16 (bf16-friendly sublane tiling) or the full dim; shrink so
    the grid has enough steps for v7x's two TensorCores at small batch.
    """
    if t_grp <= 16:
        return t_grp                      # block == full dim (always legal)
    tg = min(tg_req, t_grp)
    tg = max(16, (tg // 16) * 16)
    while tg > 16 and batch * (-(-t_grp // tg)) < 16:
        tg = max(16, ((tg // 2) // 16) * 16)
    return tg


def location_layer_kernel(x_ref, w_ref, b_ref, out_ref):
    # x_ref  : (1, tg, G*K*C) bf16 -- grouped im2col rows, lane-dense (256 lanes)
    # w_ref  : (G*K*C, G*A)   bf16 -- block-diagonal fused conv+proj weights
    # b_ref  : (1, G*A)       f32  -- grouped bias
    # out_ref: (1, tg, G*A)   f32  -- lane-dense grouped output (128 lanes)
    acc = jnp.dot(x_ref[0], w_ref[...], preferred_element_type=jnp.float32)
    out_ref[0] = (acc + b_ref[...]).astype(out_ref.dtype)


def location_layer_forward(x, conv_w, proj_w, proj_b, *, kernel_size, padding,
                           t_tile=2048):
    """x: (B, 2, T) f32; conv_w: (F, 2, K); proj_w: (A, F); proj_b: (A,)."""
    B, C, T = x.shape
    F, C2, K = conv_w.shape
    A = proj_w.shape[0]
    assert C == C2 and K == kernel_size
    T_out = T + 2 * padding - K + 1
    assert T_out > 0

    G = 4                                  # time-group size -> G*A = 128 lanes
    assert (G * A) % 128 == 0, "attention_dim must give lane-dense G*A"

    # ---- grouped time tiling ----
    T_grp = -(-T_out // G)                 # grouped output rows (exact)
    tg = _choose_group_tile(T_grp, max(1, t_tile // G), B)
    num_t = -(-T_grp // tg)
    T_grp_pad = num_t * tg                 # input im2col padded to tile multiple
    S_in = T_grp_pad * G                   # time steps materialized in im2col
    L = S_in + K - 1                       # zero-padded input length needed

    # ---- one-time weight fusion (tiny GEMMs in the wrapper) ----
    # w_flat[k*C + c, a] = sum_f conv_w[f, c, k] * proj_w[a, f]
    w_flat = jnp.einsum("fck,af->kca", conv_w, proj_w).reshape(K * C, A)
    w_blk = jnp.kron(jnp.eye(G, dtype=jnp.float32), w_flat).astype(jnp.bfloat16)
    b_grp = jnp.tile(proj_b, G).reshape(1, G * A).astype(jnp.float32)

    # ---- grouped im2col: (B, T_grp_pad, G*K*C) bf16, fully lane-dense ----
    x_t = jnp.transpose(x, (0, 2, 1))                       # (B, T, C)
    x_pad = jnp.pad(x_t, ((0, 0), (padding, L - padding - T), (0, 0)))
    r = jnp.arange(T_grp_pad)[:, None, None]
    g = jnp.arange(G)[None, :, None]
    k = jnp.arange(K)[None, None, :]
    tidx = r * G + g + k                                     # (T_grp_pad, G, K)
    patches = x_pad[:, tidx, :]                              # (B, T_grp_pad, G, K, C)
    patches = patches.reshape(B, T_grp_pad, G * K * C).astype(jnp.bfloat16)

    out_grp = pl.pallas_call(
        location_layer_kernel,
        out_shape=jax.ShapeDtypeStruct((B, T_grp, G * A), jnp.float32),
        grid_spec=pltpu.PrefetchScalarGridSpec(
            num_scalar_prefetch=0,
            grid=(B, num_t),
            in_specs=[
                pl.BlockSpec((1, tg, G * K * C), lambda b, t: (b, t, 0)),
                pl.BlockSpec((G * K * C, G * A), lambda b, t: (0, 0)),
                pl.BlockSpec((1, G * A), lambda b, t: (0, 0)),
            ],
            out_specs=pl.BlockSpec((1, tg, G * A), lambda b, t: (b, t, 0)),
        ),
        compiler_params=pltpu.CompilerParams(
            dimension_semantics=("parallel", "parallel"),
            vmem_limit_bytes=32 * 1024 * 1024,
        ),
    )(patches, w_blk, b_grp)

    out = out_grp.reshape(B, T_grp * G, A)   # free contiguous un-grouping
    if T_grp * G != T_out:                   # only when T_out % 4 != 0
        out = out[:, :T_out, :]
    return out


def reference_forward(x, conv_w, proj_w, proj_b, *, padding):
    """Pure-JAX f32 reference matching PyTorch Conv1d + Linear semantics."""
    conv = lax.conv_general_dilated(
        x, conv_w, window_strides=(1,), padding=[(padding, padding)],
        dimension_numbers=("NCH", "OIH", "NCH"))
    return conv.transpose(0, 2, 1) @ proj_w.T + proj_b


def reference_bf16(x, conv_w, proj_w, proj_b, *, padding):
    """Reference using the same bf16-rounded operands as the kernel (tight check)."""
    B, C, T = x.shape
    F, _, K = conv_w.shape
    T_out = T + 2 * padding - K + 1
    w_fused = jnp.einsum("fck,af->kca", conv_w, proj_w)
    w_fused = w_fused.astype(jnp.bfloat16).astype(jnp.float32)
    x_t = jnp.transpose(x, (0, 2, 1)).astype(jnp.bfloat16).astype(jnp.float32)
    x_pad = jnp.pad(x_t, ((0, 0), (padding, padding), (0, 0)))
    idx = jnp.arange(T_out)[:, None] + jnp.arange(K)[None, :]    # (T_out, K)
    win = x_pad[:, idx, :]                                       # (B, T_out, K, C)
    return jnp.einsum("bskc,kca->bsa", win, w_fused,
                      precision=lax.Precision.HIGHEST) + proj_b


if __name__ == "__main__":
    # Small deterministic setup.
    attention_dim = 32
    n_filters = 32
    kernel_size = 32
    padding = (kernel_size - 1) // 2      # 15
    B, T = 2, 160                         # T_out = 159 -> ragged group + ragged tile

    key = jax.random.PRNGKey(0)
    k_x, k_cw, k_pw, k_pb = jax.random.split(key, 4)

    gain_tanh = 5.0 / 3.0
    conv_w = _xavier_uniform(k_cw, (n_filters, 2, kernel_size),
                             fan_in=2 * kernel_size,
                             fan_out=n_filters * kernel_size, gain=gain_tanh)
    proj_w = _xavier_uniform(k_pw, (attention_dim, n_filters),
                             fan_in=n_filters, fan_out=attention_dim,
                             gain=gain_tanh)
    b_bound = 1.0 / math.sqrt(n_filters)
    proj_b = jax.random.uniform(k_pb, (attention_dim,), jnp.float32,
                                -b_bound, b_bound)

    x = jax.random.normal(k_x, (B, 2, T), jnp.float32)

    out = location_layer_forward(x, conv_w, proj_w, proj_b,
                                 kernel_size=kernel_size, padding=padding,
                                 t_tile=64)   # small tile -> multi-step grid
    out = jax.block_until_ready(out)

    T_out = T + 2 * padding - kernel_size + 1
    assert out.shape == (B, T_out, attention_dim), out.shape

    ref_tight = reference_bf16(x, conv_w, proj_w, proj_b, padding=padding)
    assert jnp.allclose(out, ref_tight, atol=1e-3, rtol=1e-3), \
        "mismatch vs bf16-consistent reference"

    ref = reference_forward(x, conv_w, proj_w, proj_b, padding=padding)
    assert jnp.allclose(out, ref, atol=5e-2, rtol=5e-2), \
        "mismatch vs f32 PyTorch-semantics reference"

    print("KERNEL_OK")
</pallas_src>

<mosaic_0001>
module attributes {stable_mosaic.version = 11 : i64} {
  func.func @location_layer_kernel(%arg0: i32, %arg1: i32, %arg2: memref<1x16x256xbf16, #tpu.memory_space<vmem>>, %arg3: memref<256x128xbf16, #tpu.memory_space<vmem>>, %arg4: memref<1x128xf32, #tpu.memory_space<vmem>>, %arg5: memref<1x16x128xf32, #tpu.memory_space<vmem>>) attributes {dimension_semantics = [#tpu.dimension_semantics<parallel>, #tpu.dimension_semantics<parallel>], iteration_bounds = array<i64: 2, 3>, scalar_prefetch = 0 : i64, scratch_operands = 0 : i64, tpu.core_type = #tpu.core_type<tc>, window_params = [{transform_indices = @transform_0, window_bounds = array<i64: 1, 16, 256>}, {pipeline_mode = #tpu.pipeline_mode<synchronous>, transform_indices = @transform_1, window_bounds = array<i64: 256, 128>}, {pipeline_mode = #tpu.pipeline_mode<synchronous>, transform_indices = @transform_2, window_bounds = array<i64: 1, 128>}, {transform_indices = @transform_3, window_bounds = array<i64: 1, 16, 128>}]} {
    %c0 = arith.constant 0 : index
    %c0_0 = arith.constant 0 : index
    %c0_1 = arith.constant 0 : index
    %0 = vector.load %arg2[%c0, %c0_0, %c0_1] : memref<1x16x256xbf16, #tpu.memory_space<vmem>>, vector<1x16x256xbf16>
    %1 = vector.shape_cast %0 : vector<1x16x256xbf16> to vector<16x256xbf16>
    %c0_2 = arith.constant 0 : index
    %c0_3 = arith.constant 0 : index
    %2 = vector.load %arg3[%c0_2, %c0_3] : memref<256x128xbf16, #tpu.memory_space<vmem>>, vector<256x128xbf16>
    %cst = arith.constant dense<0.000000e+00> : vector<16x128xf32>
    %3 = tpu.matmul %1, %2, %cst {dimension_numbers = #tpu.dot_dimension_numbers<[1], [0], [0], [1], [0, 0, 1, 1], [], []>} : vector<16x256xbf16>, vector<256x128xbf16>, vector<16x128xf32> -> vector<16x128xf32>
    %c0_4 = arith.constant 0 : index
    %c0_5 = arith.constant 0 : index
    %4 = vector.load %arg4[%c0_4, %c0_5] : memref<1x128xf32, #tpu.memory_space<vmem>>, vector<1x128xf32>
    %5 = vector.broadcast %4 : vector<1x128xf32> to vector<16x128xf32>
    %6 = arith.addf %3, %5 : vector<16x128xf32>
    %c0_6 = arith.constant 0 : index
    %c0_7 = arith.constant 0 : index
    %c0_8 = arith.constant 0 : index
    %7 = vector.load %arg5[%c0_6, %c0_7, %c0_8] : memref<1x16x128xf32, #tpu.memory_space<vmem>>, vector<1x16x128xf32>
    %8 = vector.shape_cast %7 : vector<1x16x128xf32> to vector<16x128xf32>
    %9 = vector.shape_cast %6 : vector<16x128xf32> to vector<1x16x128xf32>
    tpu.vector_store %arg5[%c0_6, %c0_7, %c0_8], %9 {strides = array<i32>} : memref<1x16x128xf32, #tpu.memory_space<vmem>>, vector<1x16x128xf32>,
    return
  }
  func.func @transform_0(%arg0: i32, %arg1: i32) -> (i32, i32, i32) {
    %c0_i32 = arith.constant 0 : i32
    %c0_i32_0 = arith.constant 0 : i32
    return %arg0, %arg1, %c0_i32 : i32, i32, i32
  }
  func.func @transform_1(%arg0: i32, %arg1: i32) -> (i32, i32) {
    %c0_i32 = arith.constant 0 : i32
    %c0_i32_0 = arith.constant 0 : i32
    %c0_i32_1 = arith.constant 0 : i32
    return %c0_i32, %c0_i32_0 : i32, i32
  }
  func.func @transform_2(%arg0: i32, %arg1: i32) -> (i32, i32) {
    %c0_i32 = arith.constant 0 : i32
    %c0_i32_0 = arith.constant 0 : i32
    %c0_i32_1 = arith.constant 0 : i32
    return %c0_i32, %c0_i32_0 : i32, i32
  }
  func.func @transform_3(%arg0: i32, %arg1: i32) -> (i32, i32, i32) {
    %c0_i32 = arith.constant 0 : i32
    %c0_i32_0 = arith.constant 0 : i32
    return %arg0, %arg1, %c0_i32 : i32, i32, i32
  }
}

</mosaic_0001>

<llo_original>
// kernel: tpu_custom_call.1
$region0: #{tpu_custom_call.1}
  #allocation0 [shape = 'u32[]', space=smem, size = 0x4, offset = 0x4, fixed_abs, tag = 'smem constant byte address 0x4 - core index']
  #allocation1 [shape = 'u32[72,128]{1,0:T(1,128)}', space=vmem, size = 0x9000, scoped, tag = 'internal scratch']
  %s0 = inlined_call_operand.hbm [shape: bf16[2,48,256], index: 0, kind: input, shape index: {}]
  %s1 = inlined_call_operand.hbm [shape: bf16[256,128], index: 1, kind: input, shape index: {}]
  %s2 = inlined_call_operand.vmem [shape: f32[1,128], index: 2, kind: input, shape index: {}]
  %s3 = inlined_call_operand.hbm [shape: f32[2,40,128], index: 3, kind: output, shape index: {}]
  %s4 = sld [smem:[#allocation0]]
  $region53: #{tpu_custom_call.1} parent=0
    _
  %s6 = ssub.s32 1, %s4
  %s7 = scalar_select 0, %s6, %s4
  $region1: #{tpu_custom_call.1} parent=0
    #allocation2 [shape = 'u8[16384]{0}', space=vmem, size = 0x4000, scoped, tag = 'input window, operand 0']
    #allocation3 [shape = 's32[2]{0}', space=sflag, size = 0x8, scoped, tag = 'scoped memory for tpu_custom_call.1']
    #allocation4 [shape = 's32[2]{0}', space=sflag, size = 0x8, scoped, tag = 'scoped memory for tpu_custom_call.1']
    #allocation5 [shape = 'u8[65536]{0}', space=vmem, size = 0x10000, scoped, tag = 'input window, operand 1, single buffered']
    #allocation6 [shape = 's32[1]{0}', space=sflag, size = 0x4, scoped, tag = 'scoped memory for tpu_custom_call.1']
    #allocation7 [shape = 'u8[16384]{0}', space=vmem, size = 0x4000, scoped, tag = 'output window, operand 0']
    %8 = vsyncpa [#allocation3], 0
    %s9 = scalar_lea.sflag [#allocation3], 1
    %10 = vsyncpa %s9, 0
    %11 = vsyncpa [#allocation6], 0
    %12 = vsyncpa [#allocation4], 0
    %s13 = scalar_lea.sflag [#allocation4], 1
    %14 = vsyncpa %s13, 0
    loop: start=0, step=1, limit=8
    $region2: #{tpu_custom_call.1} parent=1 // loop_pre_header
      _
    $region3: #{tpu_custom_call.1} parent=1 // loop_header
      %s16 = sphi 0, %s20
      %p17 = scmp.ge.s32.totalorder %s16, 8
      %s23 = sphi 0, %s35
      %s24 = sphi 0, %s31
      %s25 = sphi 0, %s23
      %s26 = sphi 0, %s24
      %s27 = sphi 0, %s25
      %s28 = sphi 0, %s26
      %s40 = sphi 0, %s42
      %s43 = sphi 0, %s40
      %s44 = sphi 0, %s43
      %s60 = sphi 0, %s44
      %s64 = sphi 0, %s64
      %s66 = sphi 0, %s64
      %s67 = sphi 0, %s66
      %s81 = sphi 0, %s67
      %s85 = sphi 0, %s85
      %s87 = sphi 0, %s85
      %s88 = sphi 0, %s87
      %s102 = sphi 0, %s88
      %s110 = sphi 0, %s112
      %s113 = sphi 0, %s110
      %s114 = sphi 0, %s113
      %s130 = sphi 0, %s114
    $region4: #{tpu_custom_call.1} parent=1 // loop_header_branch
      %19 = sbr.rel (%p17) target = $region8
    $region5: #{tpu_custom_call.1} parent=1 // loop_body
      %s21 = ssub.s32 %s16, 1
      %s22 = ssub.s32 %s16, 2
      %s29 = sadd.s32 1, %s24
      %p30 = scmp.ge.s32.totalorder %s29, 3
      %s31 = scalar_select %p30, 0, %s29
      %s32 = sadd.s32 1, %s23
      %s33 = scalar_select %p30, %s32, %s23
      %p34 = scmp.ge.s32.totalorder %s33, 2
      %s35 = scalar_select %p34, 0, %s33
      %s36 = ssub.s32 %s23, %s35
      %s37 = ssub.s32 %s24, %s31
      %s38 = sor.u32 %s36, %s37
      %p39 = scmp.eq.s32.totalorder %s38, 0
      %s41 = sadd.s32 %s40, 1
      %s42 = scalar_select %p39, %s40, %s41
      %p45 = pneg %p39
      %p46 = scmp.eq.s32.totalorder %s16, 5
      %p47 = por %p45, %p46
      %p48 = scmp.ne.s32.totalorder %s40, %s43
      %p49 = scmp.eq.s32.totalorder %s16, 0
      %p50 = por %p48, %p49
      %p51 = scmp.ne.s32.totalorder %s40, %s43
      %p52 = scmp.eq.s32.totalorder %s21, 5
      %p53 = por %p51, %p52
      %p54 = scmp.ne.s32.totalorder %s43, %s44
      %p55 = scmp.eq.s32.totalorder %s21, 0
      %p56 = por %p54, %p55
      %p57 = scmp.ne.s32.totalorder %s43, %s44
      %p58 = scmp.eq.s32.totalorder %s22, 5
      %p59 = por %p57, %p58
      %p61 = scmp.ne.s32.totalorder %s44, %s60
      %p62 = scmp.eq.s32.totalorder %s22, 0
      %p63 = por %p61, %p62
      %s65 = sadd.s32 %s64, 1
      %p68 = scmp.eq.s32.totalorder %s16, 5
      %p69 = scmp.ne.s32.totalorder %s64, %s66
      %p70 = scmp.eq.s32.totalorder %s16, 0
      %p71 = por %p69, %p70
      %p72 = scmp.ne.s32.totalorder %s64, %s66
      %p73 = scmp.eq.s32.totalorder %s21, 5
      %p74 = por %p72, %p73
      %p75 = scmp.ne.s32.totalorder %s66, %s67
      %p76 = scmp.eq.s32.totalorder %s21, 0
      %p77 = por %p75, %p76
      %p78 = scmp.ne.s32.totalorder %s66, %s67
      %p79 = scmp.eq.s32.totalorder %s22, 5
      %p80 = por %p78, %p79
      %p82 = scmp.ne.s32.totalorder %s67, %s81
      %p83 = scmp.eq.s32.totalorder %s22, 0
      %p84 = por %p82, %p83
      %s86 = sadd.s32 %s85, 1
      %p89 = scmp.eq.s32.totalorder %s16, 5
      %p90 = scmp.ne.s32.totalorder %s85, %s87
      %p91 = scmp.eq.s32.totalorder %s16, 0
      %p92 = por %p90, %p91
      %p93 = scmp.ne.s32.totalorder %s85, %s87
      %p94 = scmp.eq.s32.totalorder %s21, 5
      %p95 = por %p93, %p94
      %p96 = scmp.ne.s32.totalorder %s87, %s88
      %p97 = scmp.eq.s32.totalorder %s21, 0
      %p98 = por %p96, %p97
      %p99 = scmp.ne.s32.totalorder %s87, %s88
      %p100 = scmp.eq.s32.totalorder %s22, 5
      %p101 = por %p99, %p100
      %p103 = scmp.ne.s32.totalorder %s88, %s102
      %p104 = scmp.eq.s32.totalorder %s22, 0
      %p105 = por %p103, %p104
      %s106 = ssub.s32 %s23, %s35
      %s107 = ssub.s32 %s24, %s31
      %s108 = sor.u32 %s106, %s107
      %p109 = scmp.eq.s32.totalorder %s108, 0
      %s111 = sadd.s32 %s110, 1
      %s112 = scalar_select %p109, %s110, %s111
      %p115 = pneg %p109
      %p116 = scmp.eq.s32.totalorder %s16, 5
      %p117 = por %p115, %p116
      %p118 = scmp.ne.s32.totalorder %s110, %s113
      %p119 = scmp.eq.s32.totalorder %s16, 0
      %p120 = por %p118, %p119
      %p121 = scmp.ne.s32.totalorder %s110, %s113
      %p122 = scmp.eq.s32.totalorder %s21, 5
      %p123 = por %p121, %p122
      %p124 = scmp.ne.s32.totalorder %s113, %s114
      %p125 = scmp.eq.s32.totalorder %s21, 0
      %p126 = por %p124, %p125
      %p127 = scmp.ne.s32.totalorder %s113, %s114
      %p128 = scmp.eq.s32.totalorder %s22, 5
      %p129 = por %p127, %p128
      %p131 = scmp.ne.s32.totalorder %s114, %s130
      %p132 = scmp.eq.s32.totalorder %s22, 0
      %p133 = por %p131, %p132
      %p134 = scmp.le.s32.totalorder 1, %s16
      %p135 = scmp.lt.s32.totalorder %s16, 7
      %p136 = pnand %p134, %p135
      %p137 = pneg %p136
      // Predicated region
      $region9: #{tpu_custom_call.1} parent=5 // pred_check
        _
      $region10: #{tpu_custom_call.1} parent=5 // pred_check_branch
        %139 = sbr.rel (%p136) target = $region12
      $region11: #{tpu_custom_call.1} parent=5 // pred_region
        %s140 = ssub.s32 %s16, 1
        // Predicated region
        $region13: #{tpu_custom_call.1} parent=11 // pred_check
          %p141 = pneg %p77
        $region14: #{tpu_custom_call.1} parent=11 // pred_check_branch
          %143 = sbr.rel (%p141) target = $region16
        $region15: #{tpu_custom_call.1} parent=11 // pred_region
          %145 = vsyncadd [#allocation6], 0
          %s146 = sshll.u32 %s1, 4
          %s147 = int_to_ptr.hbm [resolvable:$true] %s146
          %s148 = sshll.u32 [#allocation5], 4
          %s149 = int_to_ptr.vmem [resolvable:$true] %s148
          %154 = dma.hbm_to_vmem [thread:$0]  %s147, 2048, %s149, [#allocation6], 64, 64, 4
        $region16: #{tpu_custom_call.1} parent=11 // pred_fallthru
          _
        // Predicated region
        $region17: #{tpu_custom_call.1} parent=11 // pred_check
          %p155 = pneg %p98
        $region18: #{tpu_custom_call.1} parent=11 // pred_check_branch
          %157 = sbr.rel (%p155) target = $region20
        $region19: #{tpu_custom_call.1} parent=11 // pred_region
          _
        $region20: #{tpu_custom_call.1} parent=11 // pred_fallthru
          _
      $region12: #{tpu_custom_call.1} parent=5 // pred_fallthru
        _
      %p158 = scmp.lt.s32.totalorder %s16, 6
      // Predicated region
      $region21: #{tpu_custom_call.1} parent=5 // pred_check
        %p159 = pneg %p158
      $region22: #{tpu_custom_call.1} parent=5 // pred_check_branch
        %161 = sbr.rel (%p159) target = $region24
      $region23: #{tpu_custom_call.1} parent=5 // pred_region
        // Predicated region
        $region25: #{tpu_custom_call.1} parent=23 // pred_check
          %p162 = pneg %p50
        $region26: #{tpu_custom_call.1} parent=23 // pred_check_branch
          %164 = sbr.rel (%p162) target = $region28
        $region27: #{tpu_custom_call.1} parent=23 // pred_region
          %s165 = sand.u32 %s40, 1
          %s166 = scalar_lea.sflag [#allocation3], %s165
          %s167 = sand.u32 %s40, 1
          %s168 = smul.addr %s167, 16
          %s169 = scalar_lea.vmem [#allocation2], %s168
          %s170 = smul.u32 2, %s24
          %172 = vsyncadd %s166, 0
          %s173 = smul.addr %s170, 2
          %s174 = smul.addr %s23, 12
          %s175 = sadd.s32 %s173, %s174
          %s176 = smul.addr %s175, 4
          %s177 = scalar_lea.hbm %s0, %s176
          %s178 = sshll.u32 %s177, 4
          %s179 = int_to_ptr.hbm [resolvable:$true] %s178
          %s180 = sshll.u32 %s169, 4
          %s181 = int_to_ptr.vmem [resolvable:$true] %s180
          %186 = dma.hbm_to_vmem [thread:$0]  %s179, 256, %s181, %s166, 128, 128, 8
        $region28: #{tpu_custom_call.1} parent=23 // pred_fallthru
          _
      $region24: #{tpu_custom_call.1} parent=5 // pred_fallthru
        _
      %p187 = scmp.le.s32.totalorder 1, %s16
      %p188 = scmp.lt.s32.totalorder %s16, 7
      %p189 = pnand %p187, %p188
      %p190 = pneg %p189
      // Predicated region
      $region29: #{tpu_custom_call.1} parent=5 // pred_check
        _
      $region30: #{tpu_custom_call.1} parent=5 // pred_check_branch
        %192 = sbr.rel (%p189) target = $region32
      $region31: #{tpu_custom_call.1} parent=5 // pred_region
        %s193 = ssub.s32 %s16, 1
        %s194 = sand.u32 %s43, 1
        %s195 = scalar_lea.sflag [#allocation3], %s194
        %s196 = sand.u32 %s43, 1
        %s197 = smul.addr %s196, 16
        %s198 = scalar_lea.vmem [#allocation2], %s197
        // Predicated region
        $region33: #{tpu_custom_call.1} parent=31 // pred_check
          %p199 = pneg %p56
        $region34: #{tpu_custom_call.1} parent=31 // pred_check_branch
          %201 = sbr.rel (%p199) target = $region36
        $region35: #{tpu_custom_call.1} parent=31 // pred_region
          %203 = dma.done %s195, 256
        $region36: #{tpu_custom_call.1} parent=31 // pred_fallthru
          _
        // Predicated region
        $region37: #{tpu_custom_call.1} parent=31 // pred_check
          %p204 = pneg %p77
        $region38: #{tpu_custom_call.1} parent=31 // pred_check_branch
          %206 = sbr.rel (%p204) target = $region40
        $region39: #{tpu_custom_call.1} parent=31 // pred_region
          %208 = dma.done [#allocation6], 2048
        $region40: #{tpu_custom_call.1} parent=31 // pred_fallthru
          _
        %s209 = sand.u32 %s43, 1
        %s210 = scalar_lea.sflag [#allocation3], %s209
        %s211 = sand.u32 %s43, 1
        %s212 = smul.addr %s211, 16
        %s213 = scalar_lea.vmem [#allocation2], %s212
        %p214 = pneg %p56
        %p215 = pneg %p53
        %p216 = pneg %p77
        %p217 = pneg %p74
        %p218 = pneg %p98
        %p219 = pneg %p95
        %p220 = pneg %p126
        %p221 = pneg %p123
        %s222 = sand.u32 %s113, 1
        %s223 = scalar_lea.sflag [#allocation4], %s222
        %s224 = sand.u32 %s113, 1
        %s225 = smul.addr %s224, 16
        %s226 = scalar_lea.vmem [#allocation7], %s225
        %s227 = smul.u32 2, %s26
        %s228 = smul.u32 2, %s26
        %s229 = ssub.s32 5, %s228
        %p230 = scmp.lt.s32.totalorder %s229, 2
        %s231 = scalar_select %p230, %s229, 2
        %s232 = smul.u32 8, %s231
        %v233 = vld [vmem:[%s198] sm:$0xff]
        %v234 = vld [vmem:[%s198 + $0x8] sm:$0xff]
        %v235 = vld [vmem:[#allocation5] sm:$0xf]
        %v236 = vld [vmem:[#allocation5 + $0x4] sm:$0xf]
        %v237 = vld [vmem:[#allocation5 + $0x8] sm:$0xf]
        %v238 = vld [vmem:[#allocation5 + $0xc] sm:$0xf]
        %v239 = vld [vmem:[#allocation5 + $0x10] sm:$0xf]
        %v240 = vld [vmem:[#allocation5 + $0x14] sm:$0xf]
        %v241 = vld [vmem:[#allocation5 + $0x18] sm:$0xf]
        %v242 = vld [vmem:[#allocation5 + $0x1c] sm:$0xf]
        %v243 = vld [vmem:[#allocation5 + $0x20] sm:$0xf]
        %v244 = vld [vmem:[#allocation5 + $0x24] sm:$0xf]
        %v245 = vld [vmem:[#allocation5 + $0x28] sm:$0xf]
        %v246 = vld [vmem:[#allocation5 + $0x2c] sm:$0xf]
        %v247 = vld [vmem:[#allocation5 + $0x30] sm:$0xf]
        %v248 = vld [vmem:[#allocation5 + $0x34] sm:$0xf]
        %v249 = vld [vmem:[#allocation5 + $0x38] sm:$0xf]
        %v250 = vld [vmem:[#allocation5 + $0x3c] sm:$0xf]
        %v251 = vld [vmem:[#allocation5 + $0x40] sm:$0xf]
        %v252 = vld [vmem:[#allocation5 + $0x44] sm:$0xf]
        %v253 = vld [vmem:[#allocation5 + $0x48] sm:$0xf]
        %v254 = vld [vmem:[#allocation5 + $0x4c] sm:$0xf]
        %v255 = vld [vmem:[#allocation5 + $0x50] sm:$0xf]
        %v256 = vld [vmem:[#allocation5 + $0x54] sm:$0xf]
        %v257 = vld [vmem:[#allocation5 + $0x58] sm:$0xf]
        %v258 = vld [vmem:[#allocation5 + $0x5c] sm:$0xf]
        %v259 = vld [vmem:[#allocation5 + $0x60] sm:$0xf]
        %v260 = vld [vmem:[#allocation5 + $0x64] sm:$0xf]
        %v261 = vld [vmem:[#allocation5 + $0x68] sm:$0xf]
        %v262 = vld [vmem:[#allocation5 + $0x6c] sm:$0xf]
        %v263 = vld [vmem:[#allocation5 + $0x70] sm:$0xf]
        %v264 = vld [vmem:[#allocation5 + $0x74] sm:$0xf]
        %v265 = vld [vmem:[#allocation5 + $0x78] sm:$0xf]
        %v266 = vld [vmem:[#allocation5 + $0x7c] sm:$0xf]
        %v267 = vld [vmem:[%s2] sm:$0x1]
        %v269 = vperm.slane %v267, 0
        %v273 = vunpack.c.l.b16 %v233
        %v274 = vunpack.c.h.b16 %v233
        %v275 = vunpack.c.l.b16 %v234
        %v276 = vunpack.c.h.b16 %v234
        %v277 = vpack.c.b16 %v275, %v273
        %v278 = vpack.c.b16 %v276, %v274
        %v313 = vunpack.c.l.b16 %v235
        %v314 = vunpack.c.l.b16 %v236
        %v315 = vunpack.c.l.b16 %v237
        %v316 = vunpack.c.l.b16 %v238
        %v317 = vunpack.c.l.b16 %v239
        %v318 = vunpack.c.l.b16 %v240
        %v319 = vunpack.c.l.b16 %v241
        %v320 = vunpack.c.l.b16 %v242
        %v321 = vunpack.c.l.b16 %v243
        %v322 = vunpack.c.l.b16 %v244
        %v323 = vunpack.c.l.b16 %v245
        %v324 = vunpack.c.l.b16 %v246
        %v325 = vunpack.c.l.b16 %v247
        %v326 = vunpack.c.l.b16 %v248
        %v327 = vunpack.c.l.b16 %v249
        %v328 = vunpack.c.l.b16 %v250
        %v329 = vunpack.c.l.b16 %v251
        %v330 = vunpack.c.l.b16 %v252
        %v331 = vunpack.c.l.b16 %v253
        %v332 = vunpack.c.l.b16 %v254
        %v333 = vunpack.c.l.b16 %v255
        %v334 = vunpack.c.l.b16 %v256
        %v335 = vunpack.c.l.b16 %v257
        %v336 = vunpack.c.l.b16 %v258
        %v337 = vunpack.c.l.b16 %v259
        %v338 = vunpack.c.l.b16 %v260
        %v339 = vunpack.c.l.b16 %v261
        %v340 = vunpack.c.l.b16 %v262
        %v341 = vunpack.c.l.b16 %v263
        %v342 = vunpack.c.l.b16 %v264
        %v343 = vunpack.c.l.b16 %v265
        %v344 = vunpack.c.l.b16 %v266
        %v345 = vpack.c.b16 %v314, %v313
        %v346 = vpack.c.b16 %v316, %v315
        %v347 = vpack.c.b16 %v318, %v317
        %v348 = vpack.c.b16 %v320, %v319
        %v349 = vpack.c.b16 %v322, %v321
        %v350 = vpack.c.b16 %v324, %v323
        %v351 = vpack.c.b16 %v326, %v325
        %v352 = vpack.c.b16 %v328, %v327
        %v353 = vpack.c.b16 %v330, %v329
        %v354 = vpack.c.b16 %v332, %v331
        %v355 = vpack.c.b16 %v334, %v333
        %v356 = vpack.c.b16 %v336, %v335
        %v357 = vpack.c.b16 %v338, %v337
        %v358 = vpack.c.b16 %v340, %v339
        %v359 = vpack.c.b16 %v342, %v341
        %v360 = vpack.c.b16 %v344, %v343
        %377 = vmatpush.bf16.msra.mxu0 %v352
        %378 = vmatpush.bf16.msra.mxu0 %v351
        %379 = vmatpush.bf16.msra.mxu0 %v350
        %380 = vmatpush.bf16.msra.mxu0 %v349
        %381 = vmatpush.bf16.msra.mxu0 %v348
        %382 = vmatpush.bf16.msra.mxu0 %v347
        %383 = vmatpush.bf16.msra.mxu0 %v346
        %384 = vmatpush.bf16.msra.mxu0 %v345
        %385 = vmatmul.bf16.gmra.mxu0 %v277
        %v386 = vpop.f32.mrf.mxu0
        %v387 = vadd.f32 %v269, %v386
        %v388 = vpop.f32.mrf.mxu0
        %v389 = vadd.f32 %v269, %v388
        %390 = vdwg.mxu0
        %391 = vmatpush.bf16.msra.mxu0 %v360
        %392 = vmatpush.bf16.msra.mxu0 %v359
        %393 = vmatpush.bf16.msra.mxu0 %v358
        %394 = vmatpush.bf16.msra.mxu0 %v357
        %395 = vmatpush.bf16.msra.mxu0 %v356
        %396 = vmatpush.bf16.msra.mxu0 %v355
        %397 = vmatpush.bf16.msra.mxu0 %v354
        %398 = vmatpush.bf16.msra.mxu0 %v353
        %399 = vmatmul.bf16.gmra.mxu0 %v278
        %v400 = vpop.f32.mrf.mxu0
        %v401 = vadd.f32 %v387, %v400
        %v402 = vpop.f32.mrf.mxu0
        %v403 = vadd.f32 %v389, %v402
        %404 = vdwg.mxu0
        %405 = vst [vmem:[%s226] sm:$0xff] %v401
        %406 = vst [vmem:[%s226 + $0x8] sm:$0xff] %v403
        %s407 = sand.u32 %s113, 1
        %s408 = scalar_lea.sflag [#allocation4], %s407
        %s409 = sand.u32 %s113, 1
        %s410 = smul.addr %s409, 16
        %s411 = scalar_lea.vmem [#allocation7], %s410
        // Predicated region
        $region41: #{tpu_custom_call.1} parent=31 // pred_check
          %p412 = pneg %p123
        $region42: #{tpu_custom_call.1} parent=31 // pred_check_branch
          %414 = sbr.rel (%p412) target = $region44
        $region43: #{tpu_custom_call.1} parent=31 // pred_region
          %s415 = smul.u32 2, %s26
          %s416 = ssub.s32 5, %s415
          %p417 = scmp.lt.s32.totalorder %s416, 2
          %s418 = scalar_select %p417, %s416, 2
          %s419 = smul.u32 8, %s418
          %s420 = ssub.s32 16, %s419
          %s421 = sshll.u32 %s420, 4
          %422 = vsyncadd %s408, %s421
          %p423 = scmp.ne.s32.totalorder 0, %s419
          %s424 = smul.addr %s25, 5
          %s425 = sadd.s32 %s415, %s424
          %s426 = smul.addr %s425, 8
          %s427 = scalar_lea.hbm %s3, %s426
          %s428 = smul.u32 8, %s418
          %s429 = sshll.u32 %s411, 4
          %s430 = int_to_ptr.vmem [resolvable:$true] %s429
          %s431 = sshll.u32 %s427, 4
          %s432 = int_to_ptr.hbm [resolvable:$true] %s431
          %s433 = sshll.u32 %s428, 4
          %437 = dma.vmem_to_hbm [thread:$0]  (%p423), %s430, %s433, %s432, %s408, 128, 128, 8
        $region44: #{tpu_custom_call.1} parent=31 // pred_fallthru
          _
      $region32: #{tpu_custom_call.1} parent=5 // pred_fallthru
        _
      %p438 = scmp.le.s32.totalorder 2, %s16
      // Predicated region
      $region45: #{tpu_custom_call.1} parent=5 // pred_check
        %p439 = pneg %p438
      $region46: #{tpu_custom_call.1} parent=5 // pred_check_branch
        %441 = sbr.rel (%p439) target = $region48
      $region47: #{tpu_custom_call.1} parent=5 // pred_region
        %s442 = ssub.s32 %s16, 2
        // Predicated region
        $region49: #{tpu_custom_call.1} parent=47 // pred_check
          %p443 = pneg %p129
        $region50: #{tpu_custom_call.1} parent=47 // pred_check_branch
          %445 = sbr.rel (%p443) target = $region52
        $region51: #{tpu_custom_call.1} parent=47 // pred_region
          %s446 = sand.u32 %s114, 1
          %s447 = scalar_lea.sflag [#allocation4], %s446
          %s448 = sand.u32 %s114, 1
          %s449 = smul.addr %s448, 16
          %s450 = scalar_lea.vmem [#allocation7], %s449
          %452 = dma.done %s447, 256
        $region52: #{tpu_custom_call.1} parent=47 // pred_fallthru
          _
      $region48: #{tpu_custom_call.1} parent=5 // pred_fallthru
        _
    $region6: #{tpu_custom_call.1} parent=1 // loop_footer
      %s20 = sadd.s32 1, %s16
    $region7: #{tpu_custom_call.1} parent=1 // loop_footer_branch
      %15 = sbr.rel target = $region3
    $region8: #{tpu_custom_call.1} parent=1 // loop_exit
      _
    %453 = vsyncpa [#allocation3], 1
    %s454 = scalar_lea.sflag [#allocation3], 1
    %455 = vsyncpa %s454, 1
    %456 = vsyncpa [#allocation6], 1
    %457 = vsyncpa [#allocation4], 1
    %s458 = scalar_lea.sflag [#allocation4], 1
    %459 = vsyncpa %s458, 1

</llo_original>
